<compile_context>
chip_gen: v7x
topology: tpu7x:2x2x1
jax: 0.10.0
libtpu: 0.0.40
codegen_flags: <defaults>
</compile_context>

<pallas_src>
import functools

import jax
import jax.numpy as jnp
from jax.experimental import pallas as pl
from jax.experimental.pallas import tpu as pltpu


def satt_kernel(seq_ref, w1_ref, w2_ref, w_ref, b_ref, v_ref, out_ref):
    # seq_ref block: (b_blk, c_in, N, T)
    Bb, C, N, T = seq_ref.shape
    seq = seq_ref[...].astype(jnp.float32)

    # conv1 (1x1, no bias) over channels, squeeze(1):
    #   f1[b, n, t] = sum_c w1[c] * seq[b, c, n, t]        (major-dim reduce, VPU adds)
    f1 = jnp.sum(seq * w1_ref[...][None], axis=1)                        # (Bb, N, T)

    # permute(0,3,1,2) + conv2 (1x1, no bias) over tem_size, squeeze(1):
    #   f2[b, c, n] = sum_t w2[t] * seq[b, c, n, t]
    f2 = jnp.sum(seq * w2_ref[...][None], axis=-1)                       # (Bb, c_in, N)

    # m1 = f1 @ w, with the whole batch block folded into the MXU M dimension.
    m1 = jnp.dot(f1.reshape(Bb * N, T), w_ref[...],
                 preferred_element_type=jnp.float32).reshape(Bb, N, C)   # (Bb, N, c_in)

    # logits = sigmoid(m1 @ f2 + b)   (batched matmul over the block)
    s = jnp.einsum('bnc,bcm->bnm', m1, f2,
                   preferred_element_type=jnp.float32) + b_ref[...]
    logits = jax.nn.sigmoid(s)                                           # (Bb, N, N)

    # logits = v @ logits   (v broadcast across the batch block)
    v_b = jnp.broadcast_to(v_ref[...], (Bb, N, N))
    logits = jnp.einsum('bnk,bkm->bnm', v_b, logits,
                        preferred_element_type=jnp.float32)              # (Bb, N, N)

    # torch.max(logits, dim=1, keepdim=True): per-column max over rows.
    logits = logits - jnp.max(logits, axis=1, keepdims=True)

    # Numerically stable softmax over the last dim; the per-row divide goes to
    # the EUP (approximate reciprocal) so the VPU slot stays free.
    logits = logits - jnp.max(logits, axis=-1, keepdims=True)
    e = jnp.exp(logits)
    denom = jnp.sum(e, axis=-1, keepdims=True)
    out_ref[...] = (e * pl.reciprocal(denom, approx=True)).astype(out_ref.dtype)


def _pick_batch_block(B, c_in, N, T, vmem_budget_bytes=8 * 1024 * 1024):
    """How many batch elements each grid step processes."""
    # Double-buffered f32 footprint of the pipelined seq and output blocks per
    # batch element; the batch-invariant weights (~2 KB) are ignored.
    bytes_per_b = 2 * 4 * (c_in * N * T + N * N)
    cap = max(1, vmem_budget_bytes // bytes_per_b)
    # Keep >= 2 grid steps so the ("parallel",) batch axis can be split across
    # the two v7x TensorCores, while still amortizing the ~0.35us/step overhead.
    target = max(1, B // 2)
    b_blk = int(min(cap, target))
    while B % b_blk:
        b_blk -= 1
    return b_blk


def satt_forward(seq, w1, w2, w, b, v, *, b_blk=None):
    B, c_in, N, T = seq.shape
    if b_blk is None:
        b_blk = _pick_batch_block(B, c_in, N, T)
    if B % b_blk:
        raise ValueError(f"b_blk={b_blk} must divide batch={B}")
    G = B // b_blk

    def invariant_spec(shape):
        ndim = len(shape)
        return pl.BlockSpec(shape, lambda g, _nd=ndim: (0,) * _nd)

    cost = pl.CostEstimate(
        # f1, f2, f1@w, m1@f2, v@logits (multiply + add each)
        flops=2 * B * (3 * c_in * N * T + c_in * N * N + N * N * N),
        transcendentals=2 * B * N * N,                      # sigmoid + exp
        bytes_accessed=4 * (B * c_in * N * T + B * N * N
                            + c_in + T + T * c_in + 2 * N * N),
    )

    return pl.pallas_call(
        satt_kernel,
        out_shape=jax.ShapeDtypeStruct((B, N, N), jnp.float32),
        grid_spec=pltpu.PrefetchScalarGridSpec(
            num_scalar_prefetch=0,
            grid=(G,),
            in_specs=[
                pl.BlockSpec((b_blk, c_in, N, T), lambda g: (g, 0, 0, 0)),  # seq
                invariant_spec((c_in, 1, 1)),   # conv1 weight
                invariant_spec((1, 1, T)),      # conv2 weight
                invariant_spec((T, c_in)),      # w
                invariant_spec((N, N)),         # b
                invariant_spec((N, N)),         # v
            ],
            out_specs=pl.BlockSpec((b_blk, N, N), lambda g: (g, 0, 0)),
        ),
        compiler_params=pltpu.CompilerParams(
            dimension_semantics=("parallel",)),
        cost_estimate=cost,
    )(seq, w1, w2, w, b, v)


def satt_reference(seq, w1, w2, w, b, v):
    # Pure-JAX reference mirroring the PyTorch forward.
    f1 = jnp.einsum('bcnt,c->bnt', seq, w1[:, 0, 0])            # (B, N, T)
    f2 = jnp.einsum('bcnt,t->bcn', seq, w2[0, 0, :])            # (B, c_in, N)
    logits = jax.nn.sigmoid(jnp.einsum('bnt,tc,bcm->bnm', f1, w, f2) + b)
    logits = jnp.einsum('nk,bkm->bnm', v, logits)
    a = jnp.max(logits, axis=1, keepdims=True)
    return jax.nn.softmax(logits - a, axis=-1)


if __name__ == "__main__":
    B, c_in, N, T = 2, 4, 16, 8   # batch, channels, num_nodes, tem_size

    key = jax.random.PRNGKey(0)
    k_seq, k_w1, k_w2, k_w, k_v = jax.random.split(key, 5)

    seq = jax.random.normal(k_seq, (B, c_in, N, T), dtype=jnp.float32)

    # Deterministic parameter init (shapes from SATT.__init__)
    # conv1.weight: (1, c_in, 1, 1) -> stored as (c_in, 1, 1)
    w1 = jax.random.uniform(k_w1, (c_in, 1, 1), dtype=jnp.float32,
                            minval=-1.0, maxval=1.0) / jnp.sqrt(float(c_in))
    # conv2.weight: (1, tem_size, 1, 1) -> stored as (1, 1, tem_size)
    w2 = jax.random.uniform(k_w2, (1, 1, T), dtype=jnp.float32,
                            minval=-1.0, maxval=1.0) / jnp.sqrt(float(T))
    # w: xavier_uniform (tem_size, c_in)
    lim_w = jnp.sqrt(6.0 / (T + c_in))
    w = jax.random.uniform(k_w, (T, c_in), dtype=jnp.float32,
                           minval=-lim_w, maxval=lim_w)
    # b: zeros (num_nodes, num_nodes)
    b = jnp.zeros((N, N), dtype=jnp.float32)
    # v: xavier_uniform (num_nodes, num_nodes)
    lim_v = jnp.sqrt(6.0 / (N + N))
    v = jax.random.uniform(k_v, (N, N), dtype=jnp.float32,
                           minval=-lim_v, maxval=lim_v)

    out = satt_forward(seq, w1, w2, w, b, v)
    out = jax.block_until_ready(out)

    ref = satt_reference(seq, w1, w2, w, b, v)
    assert out.shape == (B, N, N)
    max_err = jnp.max(jnp.abs(out - ref))
    # Tolerance accounts for the EUP approximate reciprocal in the softmax.
    assert jnp.allclose(out, ref, atol=2e-3, rtol=2e-3), (
        f"mismatch vs reference (max abs err {max_err})")

    print("KERNEL_OK")
</pallas_src>

<mosaic_0001>
module attributes {stable_mosaic.version = 11 : i64} {
  func.func @satt_kernel(%arg0: i32, %arg1: memref<1x4x16x8xf32, #tpu.memory_space<vmem>>, %arg2: memref<4x1x1xf32, #tpu.memory_space<vmem>>, %arg3: memref<1x1x8xf32, #tpu.memory_space<vmem>>, %arg4: memref<8x4xf32, #tpu.memory_space<vmem>>, %arg5: memref<16x16xf32, #tpu.memory_space<vmem>>, %arg6: memref<16x16xf32, #tpu.memory_space<vmem>>, %arg7: memref<1x16x16xf32, #tpu.memory_space<vmem>>) attributes {dimension_semantics = [#tpu.dimension_semantics<parallel>], iteration_bounds = array<i64: 2>, scalar_prefetch = 0 : i64, scratch_operands = 0 : i64, tpu.core_type = #tpu.core_type<tc>, window_params = [{transform_indices = @transform_0, window_bounds = array<i64: 1, 4, 16, 8>}, {pipeline_mode = #tpu.pipeline_mode<synchronous>, transform_indices = @transform_1, window_bounds = array<i64: 4, 1, 1>}, {pipeline_mode = #tpu.pipeline_mode<synchronous>, transform_indices = @transform_2, window_bounds = array<i64: 1, 1, 8>}, {pipeline_mode = #tpu.pipeline_mode<synchronous>, transform_indices = @transform_3, window_bounds = array<i64: 8, 4>}, {pipeline_mode = #tpu.pipeline_mode<synchronous>, transform_indices = @transform_4, window_bounds = array<i64: 16, 16>}, {pipeline_mode = #tpu.pipeline_mode<synchronous>, transform_indices = @transform_5, window_bounds = array<i64: 16, 16>}, {transform_indices = @transform_6, window_bounds = array<i64: 1, 16, 16>}]} {
    %c0 = arith.constant 0 : index
    %c0_0 = arith.constant 0 : index
    %c0_1 = arith.constant 0 : index
    %c0_2 = arith.constant 0 : index
    %0 = vector.load %arg1[%c0, %c0_0, %c0_1, %c0_2] : memref<1x4x16x8xf32, #tpu.memory_space<vmem>>, vector<1x4x16x8xf32>
    %c0_3 = arith.constant 0 : index
    %c0_4 = arith.constant 0 : index
    %c0_5 = arith.constant 0 : index
    %1 = vector.load %arg2[%c0_3, %c0_4, %c0_5] : memref<4x1x1xf32, #tpu.memory_space<vmem>>, vector<4x1x1xf32>
    %2 = vector.shape_cast %1 : vector<4x1x1xf32> to vector<1x4x1x1xf32>
    %3 = vector.broadcast %2 : vector<1x4x1x1xf32> to vector<1x4x16x8xf32>
    %4 = arith.mulf %0, %3 : vector<1x4x16x8xf32>
    %cst = arith.constant dense<0.000000e+00> : vector<1x16x8xf32>
    %5 = vector.multi_reduction <add>, %4, %cst [1] : vector<1x4x16x8xf32> to vector<1x16x8xf32>
    %c0_6 = arith.constant 0 : index
    %c0_7 = arith.constant 0 : index
    %c0_8 = arith.constant 0 : index
    %6 = vector.load %arg3[%c0_6, %c0_7, %c0_8] : memref<1x1x8xf32, #tpu.memory_space<vmem>>, vector<1x1x8xf32>
    %7 = vector.shape_cast %6 : vector<1x1x8xf32> to vector<1x1x1x8xf32>
    %8 = vector.broadcast %7 : vector<1x1x1x8xf32> to vector<1x4x16x8xf32>
    %9 = arith.mulf %0, %8 : vector<1x4x16x8xf32>
    %cst_9 = arith.constant dense<0.000000e+00> : vector<1x4x16xf32>
    %10 = vector.multi_reduction <add>, %9, %cst_9 [3] : vector<1x4x16x8xf32> to vector<1x4x16xf32>
    %11 = vector.shape_cast %5 : vector<1x16x8xf32> to vector<16x8xf32>
    %c0_10 = arith.constant 0 : index
    %c0_11 = arith.constant 0 : index
    %12 = vector.load %arg4[%c0_10, %c0_11] : memref<8x4xf32, #tpu.memory_space<vmem>>, vector<8x4xf32>
    %cst_12 = arith.constant dense<0.000000e+00> : vector<16x4xf32>
    %13 = tpu.matmul %11, %12, %cst_12 {dimension_numbers = #tpu.dot_dimension_numbers<[1], [0], [0], [1], [0, 0, 1, 1], [], []>} : vector<16x8xf32>, vector<8x4xf32>, vector<16x4xf32> -> vector<16x4xf32>
    %14 = vector.shape_cast %13 : vector<16x4xf32> to vector<1x16x4xf32>
    "tpu.trace_start"() <{level = 10 : i32, message = "bnc,bcm->bnm"}> : () -> ()
    %cst_13 = arith.constant dense<0.000000e+00> : vector<1x16x16xf32>
    %15 = tpu.matmul %14, %10, %cst_13 {dimension_numbers = #tpu.dot_dimension_numbers<[2], [1], [1], [2], [0, 0, 0, 1, 1, 2], [0], [0]>} : vector<1x16x4xf32>, vector<1x4x16xf32>, vector<1x16x16xf32> -> vector<1x16x16xf32>
    "tpu.trace_stop"() : () -> ()
    %c0_14 = arith.constant 0 : index
    %c0_15 = arith.constant 0 : index
    %16 = vector.load %arg5[%c0_14, %c0_15] : memref<16x16xf32, #tpu.memory_space<vmem>>, vector<16x16xf32>
    %17 = vector.shape_cast %16 : vector<16x16xf32> to vector<1x16x16xf32>
    %18 = arith.addf %15, %17 : vector<1x16x16xf32>
    %19 = arith.negf %18 : vector<1x16x16xf32>
    %20 = math.exp %19 : vector<1x16x16xf32>
    %cst_16 = arith.constant 1.000000e+00 : f32
    %21 = vector.broadcast %cst_16 : f32 to vector<1x16x16xf32>
    %22 = arith.addf %21, %20 : vector<1x16x16xf32>
    %23 = arith.divf %21, %22 : vector<1x16x16xf32>
    %c0_17 = arith.constant 0 : index
    %c0_18 = arith.constant 0 : index
    %24 = vector.load %arg6[%c0_17, %c0_18] : memref<16x16xf32, #tpu.memory_space<vmem>>, vector<16x16xf32>
    %25 = vector.shape_cast %24 : vector<16x16xf32> to vector<1x16x16xf32>
    "tpu.trace_start"() <{level = 10 : i32, message = "bnk,bkm->bnm"}> : () -> ()
    %cst_19 = arith.constant dense<0.000000e+00> : vector<1x16x16xf32>
    %26 = tpu.matmul %25, %23, %cst_19 {dimension_numbers = #tpu.dot_dimension_numbers<[2], [1], [1], [2], [0, 0, 0, 1, 1, 2], [0], [0]>} : vector<1x16x16xf32>, vector<1x16x16xf32>, vector<1x16x16xf32> -> vector<1x16x16xf32>
    "tpu.trace_stop"() : () -> ()
    %cst_20 = arith.constant dense<0xFF800000> : vector<1x16xf32>
    %27 = vector.multi_reduction <maximumf>, %26, %cst_20 [1] : vector<1x16x16xf32> to vector<1x16xf32>
    %28 = vector.shape_cast %27 : vector<1x16xf32> to vector<1x1x16xf32>
    %29 = vector.broadcast %28 : vector<1x1x16xf32> to vector<1x16x16xf32>
    %30 = arith.subf %26, %29 : vector<1x16x16xf32>
    %cst_21 = arith.constant dense<0xFF800000> : vector<1x16xf32>
    %31 = vector.multi_reduction <maximumf>, %30, %cst_21 [2] : vector<1x16x16xf32> to vector<1x16xf32>
    %32 = vector.shape_cast %31 : vector<1x16xf32> to vector<1x16x1xf32>
    %33 = vector.broadcast %32 : vector<1x16x1xf32> to vector<1x16x16xf32>
    %34 = arith.subf %30, %33 : vector<1x16x16xf32>
    %35 = math.exp %34 : vector<1x16x16xf32>
    %cst_22 = arith.constant dense<0.000000e+00> : vector<1x16xf32>
    %36 = vector.multi_reduction <add>, %35, %cst_22 [2] : vector<1x16x16xf32> to vector<1x16xf32>
    %37 = vector.shape_cast %36 : vector<1x16xf32> to vector<1x16x1xf32>
    %38 = tpu.reciprocal %37 {approx = true} : vector<1x16x1xf32> -> vector<1x16x1xf32>
    %39 = vector.broadcast %38 : vector<1x16x1xf32> to vector<1x16x16xf32>
    %40 = arith.mulf %35, %39 : vector<1x16x16xf32>
    %c0_23 = arith.constant 0 : index
    %c0_24 = arith.constant 0 : index
    %c0_25 = arith.constant 0 : index
    %41 = vector.load %arg7[%c0_23, %c0_24, %c0_25] : memref<1x16x16xf32, #tpu.memory_space<vmem>>, vector<1x16x16xf32>
    tpu.vector_store %arg7[%c0_23, %c0_24, %c0_25], %40 {strides = array<i32>} : memref<1x16x16xf32, #tpu.memory_space<vmem>>, vector<1x16x16xf32>,
    return
  }
  func.func @transform_0(%arg0: i32) -> (i32, i32, i32, i32) {
    %c0_i32 = arith.constant 0 : i32
    %c0_i32_0 = arith.constant 0 : i32
    %c0_i32_1 = arith.constant 0 : i32
    %c0_i32_2 = arith.constant 0 : i32
    return %arg0, %c0_i32, %c0_i32_0, %c0_i32_1 : i32, i32, i32, i32
  }
  func.func @transform_1(%arg0: i32) -> (i32, i32, i32) {
    %c0_i32 = arith.constant 0 : i32
    %c0_i32_0 = arith.constant 0 : i32
    %c0_i32_1 = arith.constant 0 : i32
    %c0_i32_2 = arith.constant 0 : i32
    return %c0_i32, %c0_i32_0, %c0_i32_1 : i32, i32, i32
  }
  func.func @transform_2(%arg0: i32) -> (i32, i32, i32) {
    %c0_i32 = arith.constant 0 : i32
    %c0_i32_0 = arith.constant 0 : i32
    %c0_i32_1 = arith.constant 0 : i32
    %c0_i32_2 = arith.constant 0 : i32
    return %c0_i32, %c0_i32_0, %c0_i32_1 : i32, i32, i32
  }
  func.func @transform_3(%arg0: i32) -> (i32, i32) {
    %c0_i32 = arith.constant 0 : i32
    %c0_i32_0 = arith.constant 0 : i32
    %c0_i32_1 = arith.constant 0 : i32
    return %c0_i32, %c0_i32_0 : i32, i32
  }
  func.func @transform_4(%arg0: i32) -> (i32, i32) {
    %c0_i32 = arith.constant 0 : i32
    %c0_i32_0 = arith.constant 0 : i32
    %c0_i32_1 = arith.constant 0 : i32
    return %c0_i32, %c0_i32_0 : i32, i32
  }
  func.func @transform_5(%arg0: i32) -> (i32, i32) {
    %c0_i32 = arith.constant 0 : i32
    %c0_i32_0 = arith.constant 0 : i32
    %c0_i32_1 = arith.constant 0 : i32
    return %c0_i32, %c0_i32_0 : i32, i32
  }
  func.func @transform_6(%arg0: i32) -> (i32, i32, i32) {
    %c0_i32 = arith.constant 0 : i32
    %c0_i32_0 = arith.constant 0 : i32
    %c0_i32_1 = arith.constant 0 : i32
    return %arg0, %c0_i32, %c0_i32_0 : i32, i32, i32
  }
}

</mosaic_0001>

<llo_original>
// kernel: tpu_custom_call.1
$region0: #{tpu_custom_call.1}
  #allocation0 [shape = 'u32[]', space=smem, size = 0x4, offset = 0x4, fixed_abs, tag = 'smem constant byte address 0x4 - core index']
  #allocation1 [shape = 'u32[144,128]{1,0:T(1,128)}', space=vmem, size = 0x12000, scoped, tag = 'internal scratch']
  %s0 = inlined_call_operand.vmem [shape: f32[2,4,16,8], index: 0, kind: input, shape index: {}]
  %s1 = inlined_call_operand.vmem [shape: f32[4,1,1], index: 1, kind: input, shape index: {}]
  %s2 = inlined_call_operand.vmem [shape: f32[1,1,8], index: 2, kind: input, shape index: {}]
  %s3 = inlined_call_operand.vmem [shape: f32[8,4], index: 3, kind: input, shape index: {}]
  %s4 = inlined_call_operand.vmem [shape: f32[16,16], index: 4, kind: input, shape index: {}]
  %s5 = inlined_call_operand.vmem [shape: f32[16,16], index: 5, kind: input, shape index: {}]
  %s6 = inlined_call_operand.hbm [shape: f32[2,16,16], index: 6, kind: output, shape index: {}]
  %s7 = sld [smem:[#allocation0]]
  $region57: #{tpu_custom_call.1} parent=0
    _
  %s9 = ssub.s32 1, %s7
  %s10 = scalar_select 0, %s9, %s7
  $region1: #{tpu_custom_call.1} parent=0
    #allocation2 [shape = 'u8[16384]{0}', space=vmem, size = 0x4000, scoped, tag = 'output window, operand 0']
    #allocation3 [shape = 's32[2]{0}', space=sflag, size = 0x8, scoped, tag = 'scoped memory for tpu_custom_call.1']
    %11 = vsyncpa [#allocation3], 0
    %s12 = scalar_lea.sflag [#allocation3], 1
    %13 = vsyncpa %s12, 0
    loop: start=0, step=1, limit=4
    $region2: #{tpu_custom_call.1} parent=1 // loop_pre_header
      _
    $region3: #{tpu_custom_call.1} parent=1 // loop_header
      %s15 = sphi 0, %s19
      %p16 = scmp.ge.s32.totalorder %s15, 4
      %s25 = sphi 0, %s27
      %s28 = sphi 0, %s25
      %s29 = sphi 0, %s28
      %s45 = sphi 0, %s29
      %s49 = sphi 0, %s49
      %s51 = sphi 0, %s49
      %s52 = sphi 0, %s51
      %s66 = sphi 0, %s52
      %s70 = sphi 0, %s70
      %s72 = sphi 0, %s70
      %s73 = sphi 0, %s72
      %s87 = sphi 0, %s73
      %s91 = sphi 0, %s91
      %s93 = sphi 0, %s91
      %s94 = sphi 0, %s93
      %s108 = sphi 0, %s94
      %s112 = sphi 0, %s112
      %s114 = sphi 0, %s112
      %s115 = sphi 0, %s114
      %s129 = sphi 0, %s115
      %s133 = sphi 0, %s133
      %s135 = sphi 0, %s133
      %s136 = sphi 0, %s135
      %s150 = sphi 0, %s136
      %s156 = sphi 0, %s158
      %s159 = sphi 0, %s156
      %s160 = sphi 0, %s159
      %s176 = sphi 0, %s160
    $region4: #{tpu_custom_call.1} parent=1 // loop_header_branch
      %18 = sbr.rel (%p16) target = $region8
    $region5: #{tpu_custom_call.1} parent=1 // loop_body
      %s20 = ssub.s32 %s15, 1
      %s21 = ssub.s32 %s15, 2
      %s22 = sadd.s32 %s15, 1
      %s23 = ssub.s32 %s15, %s22
      %p24 = scmp.eq.s32.totalorder %s23, 0
      %s26 = sadd.s32 %s25, 1
      %s27 = scalar_select %p24, %s25, %s26
      %p30 = pneg %p24
      %p31 = scmp.eq.s32.totalorder %s15, 1
      %p32 = por %p30, %p31
      %p33 = scmp.ne.s32.totalorder %s25, %s28
      %p34 = scmp.eq.s32.totalorder %s15, 0
      %p35 = por %p33, %p34
      %p36 = scmp.ne.s32.totalorder %s25, %s28
      %p37 = scmp.eq.s32.totalorder %s20, 1
      %p38 = por %p36, %p37
      %p39 = scmp.ne.s32.totalorder %s28, %s29
      %p40 = scmp.eq.s32.totalorder %s20, 0
      %p41 = por %p39, %p40
      %p42 = scmp.ne.s32.totalorder %s28, %s29
      %p43 = scmp.eq.s32.totalorder %s21, 1
      %p44 = por %p42, %p43
      %p46 = scmp.ne.s32.totalorder %s29, %s45
      %p47 = scmp.eq.s32.totalorder %s21, 0
      %p48 = por %p46, %p47
      %s50 = sadd.s32 %s49, 1
      %p53 = scmp.eq.s32.totalorder %s15, 1
      %p54 = scmp.ne.s32.totalorder %s49, %s51
      %p55 = scmp.eq.s32.totalorder %s15, 0
      %p56 = por %p54, %p55
      %p57 = scmp.ne.s32.totalorder %s49, %s51
      %p58 = scmp.eq.s32.totalorder %s20, 1
      %p59 = por %p57, %p58
      %p60 = scmp.ne.s32.totalorder %s51, %s52
      %p61 = scmp.eq.s32.totalorder %s20, 0
      %p62 = por %p60, %p61
      %p63 = scmp.ne.s32.totalorder %s51, %s52
      %p64 = scmp.eq.s32.totalorder %s21, 1
      %p65 = por %p63, %p64
      %p67 = scmp.ne.s32.totalorder %s52, %s66
      %p68 = scmp.eq.s32.totalorder %s21, 0
      %p69 = por %p67, %p68
      %s71 = sadd.s32 %s70, 1
      %p74 = scmp.eq.s32.totalorder %s15, 1
      %p75 = scmp.ne.s32.totalorder %s70, %s72
      %p76 = scmp.eq.s32.totalorder %s15, 0
      %p77 = por %p75, %p76
      %p78 = scmp.ne.s32.totalorder %s70, %s72
      %p79 = scmp.eq.s32.totalorder %s20, 1
      %p80 = por %p78, %p79
      %p81 = scmp.ne.s32.totalorder %s72, %s73
      %p82 = scmp.eq.s32.totalorder %s20, 0
      %p83 = por %p81, %p82
      %p84 = scmp.ne.s32.totalorder %s72, %s73
      %p85 = scmp.eq.s32.totalorder %s21, 1
      %p86 = por %p84, %p85
      %p88 = scmp.ne.s32.totalorder %s73, %s87
      %p89 = scmp.eq.s32.totalorder %s21, 0
      %p90 = por %p88, %p89
      %s92 = sadd.s32 %s91, 1
      %p95 = scmp.eq.s32.totalorder %s15, 1
      %p96 = scmp.ne.s32.totalorder %s91, %s93
      %p97 = scmp.eq.s32.totalorder %s15, 0
      %p98 = por %p96, %p97
      %p99 = scmp.ne.s32.totalorder %s91, %s93
      %p100 = scmp.eq.s32.totalorder %s20, 1
      %p101 = por %p99, %p100
      %p102 = scmp.ne.s32.totalorder %s93, %s94
      %p103 = scmp.eq.s32.totalorder %s20, 0
      %p104 = por %p102, %p103
      %p105 = scmp.ne.s32.totalorder %s93, %s94
      %p106 = scmp.eq.s32.totalorder %s21, 1
      %p107 = por %p105, %p106
      %p109 = scmp.ne.s32.totalorder %s94, %s108
      %p110 = scmp.eq.s32.totalorder %s21, 0
      %p111 = por %p109, %p110
      %s113 = sadd.s32 %s112, 1
      %p116 = scmp.eq.s32.totalorder %s15, 1
      %p117 = scmp.ne.s32.totalorder %s112, %s114
      %p118 = scmp.eq.s32.totalorder %s15, 0
      %p119 = por %p117, %p118
      %p120 = scmp.ne.s32.totalorder %s112, %s114
      %p121 = scmp.eq.s32.totalorder %s20, 1
      %p122 = por %p120, %p121
      %p123 = scmp.ne.s32.totalorder %s114, %s115
      %p124 = scmp.eq.s32.totalorder %s20, 0
      %p125 = por %p123, %p124
      %p126 = scmp.ne.s32.totalorder %s114, %s115
      %p127 = scmp.eq.s32.totalorder %s21, 1
      %p128 = por %p126, %p127
      %p130 = scmp.ne.s32.totalorder %s115, %s129
      %p131 = scmp.eq.s32.totalorder %s21, 0
      %p132 = por %p130, %p131
      %s134 = sadd.s32 %s133, 1
      %p137 = scmp.eq.s32.totalorder %s15, 1
      %p138 = scmp.ne.s32.totalorder %s133, %s135
      %p139 = scmp.eq.s32.totalorder %s15, 0
      %p140 = por %p138, %p139
      %p141 = scmp.ne.s32.totalorder %s133, %s135
      %p142 = scmp.eq.s32.totalorder %s20, 1
      %p143 = por %p141, %p142
      %p144 = scmp.ne.s32.totalorder %s135, %s136
      %p145 = scmp.eq.s32.totalorder %s20, 0
      %p146 = por %p144, %p145
      %p147 = scmp.ne.s32.totalorder %s135, %s136
      %p148 = scmp.eq.s32.totalorder %s21, 1
      %p149 = por %p147, %p148
      %p151 = scmp.ne.s32.totalorder %s136, %s150
      %p152 = scmp.eq.s32.totalorder %s21, 0
      %p153 = por %p151, %p152
      %s154 = ssub.s32 %s15, %s22
      %p155 = scmp.eq.s32.totalorder %s154, 0
      %s157 = sadd.s32 %s156, 1
      %s158 = scalar_select %p155, %s156, %s157
      %p161 = pneg %p155
      %p162 = scmp.eq.s32.totalorder %s15, 1
      %p163 = por %p161, %p162
      %p164 = scmp.ne.s32.totalorder %s156, %s159
      %p165 = scmp.eq.s32.totalorder %s15, 0
      %p166 = por %p164, %p165
      %p167 = scmp.ne.s32.totalorder %s156, %s159
      %p168 = scmp.eq.s32.totalorder %s20, 1
      %p169 = por %p167, %p168
      %p170 = scmp.ne.s32.totalorder %s159, %s160
      %p171 = scmp.eq.s32.totalorder %s20, 0
      %p172 = por %p170, %p171
      %p173 = scmp.ne.s32.totalorder %s159, %s160
      %p174 = scmp.eq.s32.totalorder %s21, 1
      %p175 = por %p173, %p174
      %p177 = scmp.ne.s32.totalorder %s160, %s176
      %p178 = scmp.eq.s32.totalorder %s21, 0
      %p179 = por %p177, %p178
      %p180 = scmp.le.s32.totalorder 1, %s15
      %p181 = scmp.lt.s32.totalorder %s15, 3
      %p182 = pnand %p180, %p181
      %p183 = pneg %p182
      // Predicated region
      $region9: #{tpu_custom_call.1} parent=5 // pred_check
        _
      $region10: #{tpu_custom_call.1} parent=5 // pred_check_branch
        %185 = sbr.rel (%p182) target = $region12
      $region11: #{tpu_custom_call.1} parent=5 // pred_region
        %s186 = ssub.s32 %s15, 1
        // Predicated region
        $region13: #{tpu_custom_call.1} parent=11 // pred_check
          %p187 = pneg %p62
        $region14: #{tpu_custom_call.1} parent=11 // pred_check_branch
          %189 = sbr.rel (%p187) target = $region16
        $region15: #{tpu_custom_call.1} parent=11 // pred_region
          _
        $region16: #{tpu_custom_call.1} parent=11 // pred_fallthru
          _
        // Predicated region
        $region17: #{tpu_custom_call.1} parent=11 // pred_check
          %p190 = pneg %p83
        $region18: #{tpu_custom_call.1} parent=11 // pred_check_branch
          %192 = sbr.rel (%p190) target = $region20
        $region19: #{tpu_custom_call.1} parent=11 // pred_region
          _
        $region20: #{tpu_custom_call.1} parent=11 // pred_fallthru
          _
        // Predicated region
        $region21: #{tpu_custom_call.1} parent=11 // pred_check
          %p193 = pneg %p104
        $region22: #{tpu_custom_call.1} parent=11 // pred_check_branch
          %195 = sbr.rel (%p193) target = $region24
        $region23: #{tpu_custom_call.1} parent=11 // pred_region
          _
        $region24: #{tpu_custom_call.1} parent=11 // pred_fallthru
          _
        // Predicated region
        $region25: #{tpu_custom_call.1} parent=11 // pred_check
          %p196 = pneg %p125
        $region26: #{tpu_custom_call.1} parent=11 // pred_check_branch
          %198 = sbr.rel (%p196) target = $region28
        $region27: #{tpu_custom_call.1} parent=11 // pred_region
          _
        $region28: #{tpu_custom_call.1} parent=11 // pred_fallthru
          _
        // Predicated region
        $region29: #{tpu_custom_call.1} parent=11 // pred_check
          %p199 = pneg %p146
        $region30: #{tpu_custom_call.1} parent=11 // pred_check_branch
          %201 = sbr.rel (%p199) target = $region32
        $region31: #{tpu_custom_call.1} parent=11 // pred_region
          _
        $region32: #{tpu_custom_call.1} parent=11 // pred_fallthru
          _
      $region12: #{tpu_custom_call.1} parent=5 // pred_fallthru
        _
      %p202 = scmp.lt.s32.totalorder %s15, 2
      // Predicated region
      $region33: #{tpu_custom_call.1} parent=5 // pred_check
        %p203 = pneg %p202
      $region34: #{tpu_custom_call.1} parent=5 // pred_check_branch
        %205 = sbr.rel (%p203) target = $region36
      $region35: #{tpu_custom_call.1} parent=5 // pred_region
        // Predicated region
        $region37: #{tpu_custom_call.1} parent=35 // pred_check
          %p206 = pneg %p35
        $region38: #{tpu_custom_call.1} parent=35 // pred_check_branch
          %208 = sbr.rel (%p206) target = $region40
        $region39: #{tpu_custom_call.1} parent=35 // pred_region
          %p209 = scmp.lt.s32.totalorder %s15, 1
          %s210 = scalar_select %p209, %s15, 1
          %s211 = smul.addr %s210, 8
          %s212 = smul.addr %s211, 8
          %s213 = scalar_lea.vmem %s0, %s212
        $region40: #{tpu_custom_call.1} parent=35 // pred_fallthru
          _
      $region36: #{tpu_custom_call.1} parent=5 // pred_fallthru
        _
      %p214 = scmp.le.s32.totalorder 1, %s15
      %p215 = scmp.lt.s32.totalorder %s15, 3
      %p216 = pnand %p214, %p215
      %p217 = pneg %p216
      // Predicated region
      $region41: #{tpu_custom_call.1} parent=5 // pred_check
        _
      $region42: #{tpu_custom_call.1} parent=5 // pred_check_branch
        %219 = sbr.rel (%p216) target = $region44
      $region43: #{tpu_custom_call.1} parent=5 // pred_region
        %s220 = ssub.s32 %s15, 1
        %p221 = scmp.lt.s32.totalorder %s20, 1
        %s222 = scalar_select %p221, %s20, 1
        %s223 = smul.addr %s222, 8
        %s224 = smul.addr %s223, 8
        %s225 = scalar_lea.vmem %s0, %s224
        %p226 = pneg %p41
        %p227 = pneg %p38
        %p228 = pneg %p62
        %p229 = pneg %p59
        %p230 = pneg %p83
        %p231 = pneg %p80
        %p232 = pneg %p104
        %p233 = pneg %p101
        %p234 = pneg %p125
        %p235 = pneg %p122
        %p236 = pneg %p146
        %p237 = pneg %p143
        %p238 = pneg %p172
        %p239 = pneg %p169
        %s240 = sand.u32 %s159, 1
        %s241 = scalar_lea.sflag [#allocation3], %s240
        %s242 = sand.u32 %s159, 1
        %s243 = smul.addr %s242, 16
        %s244 = scalar_lea.vmem [#allocation2], %s243
        %p245 = scmp.lt.s32.totalorder %s20, 1
        %s246 = scalar_select %p245, %s20, 1
        %s247 = smul.addr %s246, 8
        %s248 = smul.addr %s247, 8
        %s249 = scalar_lea.vmem %s0, %s248
        %v250 = vld [vmem:[%s249] sm:$0xff]
        %v251 = vld [vmem:[%s249 + $0x8] sm:$0xff]
        %v252 = vld [vmem:[%s249 + $0x10] sm:$0xff]
        %v253 = vld [vmem:[%s249 + $0x18] sm:$0xff]
        %v254 = vld [vmem:[%s249 + $0x20] sm:$0xff]
        %v255 = vld [vmem:[%s249 + $0x28] sm:$0xff]
        %v256 = vld [vmem:[%s249 + $0x30] sm:$0xff]
        %v257 = vld [vmem:[%s249 + $0x38] sm:$0xff]
        %v258 = vld [vmem:[%s1] sm:$0x1]
        %v259 = vld [vmem:[%s1 + $0x1] sm:$0x1]
        %v260 = vld [vmem:[%s1 + $0x2] sm:$0x1]
        %v261 = vld [vmem:[%s1 + $0x3] sm:$0x1]
        %v266 = vlaneseq
        %v267 = vshrl.u32 %v266, 7
        %v268 = vsub.s32 0, %v267
        %v269 = vrot.slane %v258, %v268
        %v270 = vlaneseq
        %v271 = vshrl.u32 %v270, 7
        %v272 = vsub.s32 0, %v271
        %v273 = vrot.slane %v259, %v272
        %v274 = vlaneseq
        %v275 = vshrl.u32 %v274, 7
        %v276 = vsub.s32 0, %v275
        %v277 = vrot.slane %v260, %v276
        %v278 = vlaneseq
        %v279 = vshrl.u32 %v278, 7
        %v280 = vsub.s32 0, %v279
        %v281 = vrot.slane %v261, %v280
        %282 = vset.pattern.permute.xlu0 0
        %283 = vperm.xlu0 %282, %v269
        %v284 = vpop.permute.xlu0 %283
        %286 = vset.pattern.permute.xlu0 0
        %287 = vperm.xlu0 %286, %v273
        %v288 = vpop.permute.xlu0 %287
        %290 = vset.pattern.permute.xlu0 0
        %291 = vperm.xlu0 %290, %v277
        %v292 = vpop.permute.xlu0 %291
        %294 = vset.pattern.permute.xlu0 0
        %295 = vperm.xlu0 %294, %v281
        %v296 = vpop.permute.xlu0 %295
        %v298 = vmul.f32 %v250, %v284
        %v299 = vmul.f32 %v251, %v284
        %v300 = vmul.f32 %v252, %v288
        %v301 = vmul.f32 %v253, %v288
        %v302 = vmul.f32 %v254, %v292
        %v303 = vmul.f32 %v255, %v292
        %v304 = vmul.f32 %v256, %v296
        %v305 = vmul.f32 %v257, %v296
        %vm306 = vcmask 64512
        %v307 = vsel %vm306, %v298, 0.0
        %v308 = vsel %vm306, %v300, 0.0
        %v309 = vadd.f32 %v307, %v308
        %v310 = vsel %vm306, %v302, 0.0
        %v311 = vadd.f32 %v309, %v310
        %v312 = vsel %vm306, %v304, 0.0
        %v313 = vadd.f32 %v311, %v312
        %v314 = vsel %vm306, %v299, 0.0
        %v315 = vsel %vm306, %v301, 0.0
        %v316 = vadd.f32 %v314, %v315
        %v317 = vsel %vm306, %v303, 0.0
        %v318 = vadd.f32 %v316, %v317
        %v319 = vsel %vm306, %v305, 0.0
        %v320 = vadd.f32 %v318, %v319
        %v321 = vld [vmem:[%s2] sm:$0x1]
        %v323 = vlaneseq
        %v324 = vshrl.u32 %v323, 7
        %v325 = vsub.s32 0, %v324
        %v326 = vrot.slane %v321, %v325
        %v328 = vmul.f32 %v250, %v326
        %v329 = vmul.f32 %v251, %v326
        %v330 = vmul.f32 %v252, %v326
        %v331 = vmul.f32 %v253, %v326
        %v332 = vmul.f32 %v254, %v326
        %v333 = vmul.f32 %v255, %v326
        %v334 = vmul.f32 %v256, %v326
        %v335 = vmul.f32 %v257, %v326
        %v336 = vsel %vm306, %v328, 0.0
        %337 = vadd.xlane.f32.xlu0 %v336
        %v338 = vpop.xlane.xlu0 %337
        %v339 = vsel %vm306, %v329, 0.0
        %340 = vadd.xlane.f32.xlu0 %v339
        %v341 = vpop.xlane.xlu0 %340
        %v342 = vsel %vm306, %v330, 0.0
        %343 = vadd.xlane.f32.xlu0 %v342
        %v344 = vpop.xlane.xlu0 %343
        %v345 = vsel %vm306, %v331, 0.0
        %346 = vadd.xlane.f32.xlu0 %v345
        %v347 = vpop.xlane.xlu0 %346
        %v348 = vsel %vm306, %v332, 0.0
        %349 = vadd.xlane.f32.xlu0 %v348
        %v350 = vpop.xlane.xlu0 %349
        %v351 = vsel %vm306, %v333, 0.0
        %352 = vadd.xlane.f32.xlu0 %v351
        %v353 = vpop.xlane.xlu0 %352
        %v354 = vsel %vm306, %v334, 0.0
        %355 = vadd.xlane.f32.xlu0 %v354
        %v356 = vpop.xlane.xlu0 %355
        %v357 = vsel %vm306, %v335, 0.0
        %358 = vadd.xlane.f32.xlu0 %v357
        %v359 = vpop.xlane.xlu0 %358
        %v360 = vld [vmem:[%s3] sm:$0xff]
        %v362 = vsel %vm306, %v313, 0
        %v365 = vsel %vm306, %v320, 0
        %367 = vmatprep.subr.mxu0 0.0
        %368 = vmatpush1.msra.mxu0 %v360
        %369 = vmatprep.subr.mxu0 0.0
        %370 = vmatpush1.msra.mxu0 0.0
        %371 = vmatprep.subr.mxu0 0.0
        %372 = vmatpush1.msra.mxu0 0.0
        %373 = vmatprep.subr.mxu0 0.0
        %374 = vmatpush1.msra.mxu0 0.0
        %375 = vmatprep.subr.mxu0 0.0
        %376 = vmatpush1.msra.mxu0 0.0
        %377 = vmatprep.subr.mxu0 0.0
        %378 = vmatpush1.msra.mxu0 0.0
        %379 = vmatprep.subr.mxu0 0.0
        %380 = vmatpush1.msra.mxu0 0.0
        %381 = vmatprep.subr.mxu0 0.0
        %382 = vmatpush1.msra.mxu0 0.0
        %383 = vmatprep.subr.mxu0 0.0
        %384 = vmatpush1.msra.mxu0 0.0
        %385 = vmatprep.subr.mxu0 0.0
        %386 = vmatpush1.msra.mxu0 0.0
        %387 = vmatprep.subr.mxu0 0.0
        %388 = vmatpush1.msra.mxu0 0.0
        %389 = vmatprep.subr.mxu0 0.0
        %390 = vmatpush1.msra.mxu0 0.0
        %391 = vmatprep.subr.mxu0 0.0
        %392 = vmatpush1.msra.mxu0 0.0
        %393 = vmatprep.subr.mxu0 0.0
        %394 = vmatpush1.msra.mxu0 0.0
        %395 = vmatprep.subr.mxu0 0.0
        %396 = vmatpush1.msra.mxu0 0.0
        %397 = vmatprep.subr.mxu0 0.0
        %398 = vmatpush1.msra.mxu0 0.0
        %399 = vmatprep.subr.mxu0 0.0
        %400 = vmatpush1.msra.mxu0 0.0
        %401 = vmatprep.subr.mxu0 0.0
        %402 = vmatpush1.msra.mxu0 0.0
        %403 = vmatprep.subr.mxu0 0.0
        %404 = vmatpush1.msra.mxu0 0.0
        %405 = vmatprep.subr.mxu0 0.0
        %406 = vmatpush1.msra.mxu0 0.0
        %407 = vmatprep.subr.mxu0 0.0
        %408 = vmatpush1.msra.mxu0 0.0
        %409 = vmatprep.subr.mxu0 0.0
        %410 = vmatpush1.msra.mxu0 0.0
        %411 = vmatprep.subr.mxu0 0.0
        %412 = vmatpush1.msra.mxu0 0.0
        %413 = vmatprep.subr.mxu0 0.0
        %414 = vmatpush1.msra.mxu0 0.0
        %415 = vmatprep.subr.mxu0 0.0
        %416 = vmatpush1.msra.mxu0 0.0
        %417 = vmatprep.subr.mxu0 0.0
        %418 = vmatpush1.msra.mxu0 0.0
        %419 = vmatprep.subr.mxu0 0.0
        %420 = vmatpush1.msra.mxu0 0.0
        %421 = vmatprep.subr.mxu0 0.0
        %422 = vmatpush1.msra.mxu0 0.0
        %423 = vmatprep.subr.mxu0 0.0
        %424 = vmatpush1.msra.mxu0 0.0
        %425 = vmatprep.subr.mxu0 0.0
        %426 = vmatpush1.msra.mxu0 0.0
        %427 = vmatprep.subr.mxu0 0.0
        %428 = vmatpush1.msra.mxu0 0.0
        %429 = vmatprep.subr.mxu0 0.0
        %430 = vmatpush1.msra.mxu0 0.0
        %431 = vmatprep.mubr.f32.mxu0 0.0
        %432 = vmatmul.mubr.f32.gmra.mrb[0].mxu0 %v362
        %v433 = vpop.f32.mrb[0].mxu0
        %v434 = vadd.f32 0.0, %v433
        %v435 = vpop.f32.mrb[0].mxu0
        %436 = vmatprep.mubr.f32.mxu0 0.0
        %437 = vmatmul.mubr.f32.gmra.mrb[0].mxu0 %v365
        %v438 = vpop.f32.mrb[0].mxu0
        %v439 = vadd.f32 0.0, %v438
        %v440 = vpop.f32.mrb[0].mxu0
        %441 = vdwg.mxu0
        %v442 = vld [vmem:[%s4] sm:$0xff]
        %v443 = vld [vmem:[%s4 + $0x8] sm:$0xff]
        %v452 = vlaneseq
        %v453 = vand.u32 %v452, 127
        %v454 = vlaneseq
        %v455 = vshrl.u32 %v454, 7
        %v456 = vsub.s32 %v453, %v455
        %v457 = vrot.slane %v338, %v456
        %v458 = vadd.s32 %v453, 4294967288
        %v459 = vlaneseq
        %v460 = vshrl.u32 %v459, 7
        %v461 = vsub.s32 %v458, %v460
        %v462 = vrot.slane %v341, %v461
        %vm463 = vcmask 130112
        %v464 = vsel %vm463, %v462, %v457
        %v465 = vlaneseq
        %v466 = vshrl.u32 %v465, 7
        %v467 = vsub.s32 %v453, %v466
        %v468 = vrot.slane %v344, %v467
        %v469 = vlaneseq
        %v470 = vshrl.u32 %v469, 7
        %v471 = vsub.s32 %v458, %v470
        %v472 = vrot.slane %v347, %v471
        %v473 = vsel %vm463, %v472, %v468
        %v474 = vlaneseq
        %v475 = vshrl.u32 %v474, 7
        %v476 = vsub.s32 %v453, %v475
        %v477 = vrot.slane %v350, %v476
        %v478 = vlaneseq
        %v479 = vshrl.u32 %v478, 7
        %v480 = vsub.s32 %v458, %v479
        %v481 = vrot.slane %v353, %v480
        %v482 = vsel %vm463, %v481, %v477
        %v483 = vlaneseq
        %v484 = vshrl.u32 %v483, 7
        %v485 = vsub.s32 %v453, %v484
        %v486 = vrot.slane %v356, %v485
        %v487 = vlaneseq
        %v488 = vshrl.u32 %v487, 7
        %v489 = vsub.s32 %v458, %v488
        %v490 = vrot.slane %v359, %v489
        %v491 = vsel %vm463, %v490, %v486
        %vm492 = vcmask 1041409
        %v493 = vsel %vm492, %v473, %v464
        %vm494 = vcmask 1042434
        %v495 = vsel %vm494, %v482, %v493
        %vm496 = vcmask 1043459
        %v497 = vsel %vm496, %v491, %v495
        %vm498 = vcmask 31744
        %v500 = vsel %vm498, %v434, 0
        %v503 = vsel %vm498, %v439, 0
        %vm505 = vcmask 1043456
        %v506 = vsel %vm505, %v497, 0
        %508 = vmatprep.subr.mxu0 0.0
        %509 = vmatpush1.msra.mxu0 %v506
        %510 = vmatprep.subr.mxu0 0.0
        %511 = vmatpush1.msra.mxu0 0.0
        %512 = vmatprep.subr.mxu0 0.0
        %513 = vmatpush1.msra.mxu0 0.0
        %514 = vmatprep.subr.mxu0 0.0
        %515 = vmatpush1.msra.mxu0 0.0
        %516 = vmatprep.subr.mxu0 0.0
        %517 = vmatpush1.msra.mxu0 0.0
        %518 = vmatprep.subr.mxu0 0.0
        %519 = vmatpush1.msra.mxu0 0.0
        %520 = vmatprep.subr.mxu0 0.0
        %521 = vmatpush1.msra.mxu0 0.0
        %522 = vmatprep.subr.mxu0 0.0
        %523 = vmatpush1.msra.mxu0 0.0
        %524 = vmatprep.subr.mxu0 0.0
        %525 = vmatpush1.msra.mxu0 0.0
        %526 = vmatprep.subr.mxu0 0.0
        %527 = vmatpush1.msra.mxu0 0.0
        %528 = vmatprep.subr.mxu0 0.0
        %529 = vmatpush1.msra.mxu0 0.0
        %530 = vmatprep.subr.mxu0 0.0
        %531 = vmatpush1.msra.mxu0 0.0
        %532 = vmatprep.subr.mxu0 0.0
        %533 = vmatpush1.msra.mxu0 0.0
        %534 = vmatprep.subr.mxu0 0.0
        %535 = vmatpush1.msra.mxu0 0.0
        %536 = vmatprep.subr.mxu0 0.0
        %537 = vmatpush1.msra.mxu0 0.0
        %538 = vmatprep.subr.mxu0 0.0
        %539 = vmatpush1.msra.mxu0 0.0
        %540 = vmatprep.subr.mxu0 0.0
        %541 = vmatpush1.msra.mxu0 0.0
        %542 = vmatprep.subr.mxu0 0.0
        %543 = vmatpush1.msra.mxu0 0.0
        %544 = vmatprep.subr.mxu0 0.0
        %545 = vmatpush1.msra.mxu0 0.0
        %546 = vmatprep.subr.mxu0 0.0
        %547 = vmatpush1.msra.mxu0 0.0
        %548 = vmatprep.subr.mxu0 0.0
        %549 = vmatpush1.msra.mxu0 0.0
        %550 = vmatprep.subr.mxu0 0.0
        %551 = vmatpush1.msra.mxu0 0.0
        %552 = vmatprep.subr.mxu0 0.0
        %553 = vmatpush1.msra.mxu0 0.0
        %554 = vmatprep.subr.mxu0 0.0
        %555 = vmatpush1.msra.mxu0 0.0
        %556 = vmatprep.subr.mxu0 0.0
        %557 = vmatpush1.msra.mxu0 0.0
        %558 = vmatprep.subr.mxu0 0.0
        %559 = vmatpush1.msra.mxu0 0.0
        %560 = vmatprep.subr.mxu0 0.0
        %561 = vmatpush1.msra.mxu0 0.0
        %562 = vmatprep.subr.mxu0 0.0
        %563 = vmatpush1.msra.mxu0 0.0
        %564 = vmatprep.subr.mxu0 0.0
        %565 = vmatpush1.msra.mxu0 0.0
        %566 = vmatprep.subr.mxu0 0.0
        %567 = vmatpush1.msra.mxu0 0.0
        %568 = vmatprep.subr.mxu0 0.0
        %569 = vmatpush1.msra.mxu0 0.0
        %570 = vmatprep.subr.mxu0 0.0
        %571 = vmatpush1.msra.mxu0 0.0
        %572 = vmatprep.mubr.f32.mxu0 0.0
        %573 = vmatmul.mubr.f32.gmra.mrb[0].mxu0 %v500
        %v574 = vpop.f32.mrb[0].mxu0
        %v575 = vadd.f32 %v442, %v574
        %v576 = vpop.f32.mrb[0].mxu0
        %577 = vmatprep.mubr.f32.mxu0 0.0
        %578 = vmatmul.mubr.f32.gmra.mrb[0].mxu0 %v503
        %v579 = vpop.f32.mrb[0].mxu0
        %v580 = vadd.f32 %v443, %v579
        %v581 = vpop.f32.mrb[0].mxu0
        %582 = vdwg.mxu0
        %v583 = vxor.u32 %v575, 2147483648
        %v584 = vxor.u32 %v580, 2147483648
        %v585 = vmul.f32 %v583, 1.442695
        %v586 = vpow.pop %v585
        %v587 = vmul.f32 %v584, 1.442695
        %v588 = vpow.pop %v587
        %v589 = vadd.f32 %v586, 1.0
        %v590 = vadd.f32 %v588, 1.0
        %v591 = vrcp.pop %v589
        %v592 = vmul.f32 1.0, %v591
        %v593 = vrcp.pop %v590
        %v594 = vmul.f32 1.0, %v593
        %v595 = vld [vmem:[%s5] sm:$0xff]
        %v596 = vld [vmem:[%s5 + $0x8] sm:$0xff]
        %vm597 = vcmask 130048
        %v599 = vsel %vm597, %v595, 0
        %v602 = vsel %vm597, %v596, 0
        %604 = vmatprep.subr.mxu0 0.0
        %605 = vmatpush1.msra.mxu0 %v592
        %606 = vmatprep.subr.mxu0 0.0
        %607 = vmatpush1.msra.mxu0 %v594
        %608 = vmatprep.subr.mxu0 0.0
        %609 = vmatpush1.msra.mxu0 0.0
        %610 = vmatprep.subr.mxu0 0.0
        %611 = vmatpush1.msra.mxu0 0.0
        %612 = vmatprep.subr.mxu0 0.0
        %613 = vmatpush1.msra.mxu0 0.0
        %614 = vmatprep.subr.mxu0 0.0
        %615 = vmatpush1.msra.mxu0 0.0
        %616 = vmatprep.subr.mxu0 0.0
        %617 = vmatpush1.msra.mxu0 0.0
        %618 = vmatprep.subr.mxu0 0.0
        %619 = vmatpush1.msra.mxu0 0.0
        %620 = vmatprep.subr.mxu0 0.0
        %621 = vmatpush1.msra.mxu0 0.0
        %622 = vmatprep.subr.mxu0 0.0
        %623 = vmatpush1.msra.mxu0 0.0
        %624 = vmatprep.subr.mxu0 0.0
        %625 = vmatpush1.msra.mxu0 0.0
        %626 = vmatprep.subr.mxu0 0.0
        %627 = vmatpush1.msra.mxu0 0.0
        %628 = vmatprep.subr.mxu0 0.0
        %629 = vmatpush1.msra.mxu0 0.0
        %630 = vmatprep.subr.mxu0 0.0
        %631 = vmatpush1.msra.mxu0 0.0
        %632 = vmatprep.subr.mxu0 0.0
        %633 = vmatpush1.msra.mxu0 0.0
        %634 = vmatprep.subr.mxu0 0.0
        %635 = vmatpush1.msra.mxu0 0.0
        %636 = vmatprep.subr.mxu0 0.0
        %637 = vmatpush1.msra.mxu0 0.0
        %638 = vmatprep.subr.mxu0 0.0
        %639 = vmatpush1.msra.mxu0 0.0
        %640 = vmatprep.subr.mxu0 0.0
        %641 = vmatpush1.msra.mxu0 0.0
        %642 = vmatprep.subr.mxu0 0.0
        %643 = vmatpush1.msra.mxu0 0.0
        %644 = vmatprep.subr.mxu0 0.0
        %645 = vmatpush1.msra.mxu0 0.0
        %646 = vmatprep.subr.mxu0 0.0
        %647 = vmatpush1.msra.mxu0 0.0
        %648 = vmatprep.subr.mxu0 0.0
        %649 = vmatpush1.msra.mxu0 0.0
        %650 = vmatprep.subr.mxu0 0.0
        %651 = vmatpush1.msra.mxu0 0.0
        %652 = vmatprep.subr.mxu0 0.0
        %653 = vmatpush1.msra.mxu0 0.0
        %654 = vmatprep.subr.mxu0 0.0
        %655 = vmatpush1.msra.mxu0 0.0
        %656 = vmatprep.subr.mxu0 0.0
        %657 = vmatpush1.msra.mxu0 0.0
        %658 = vmatprep.subr.mxu0 0.0
        %659 = vmatpush1.msra.mxu0 0.0
        %660 = vmatprep.subr.mxu0 0.0
        %661 = vmatpush1.msra.mxu0 0.0
        %662 = vmatprep.subr.mxu0 0.0
        %663 = vmatpush1.msra.mxu0 0.0
        %664 = vmatprep.subr.mxu0 0.0
        %665 = vmatpush1.msra.mxu0 0.0
        %666 = vmatprep.subr.mxu0 0.0
        %667 = vmatpush1.msra.mxu0 0.0
        %668 = vmatprep.mubr.f32.mxu0 0.0
        %669 = vmatmul.mubr.f32.gmra.mrb[0].mxu0 %v599
        %v670 = vpop.f32.mrb[0].mxu0
        %v671 = vadd.f32 0.0, %v670
        %v672 = vpop.f32.mrb[0].mxu0
        %673 = vmatprep.mubr.f32.mxu0 0.0
        %674 = vmatmul.mubr.f32.gmra.mrb[0].mxu0 %v602
        %v675 = vpop.f32.mrb[0].mxu0
        %v676 = vadd.f32 0.0, %v675
        %v677 = vpop.f32.mrb[0].mxu0
        %678 = vdwg.mxu0
        %v679 = vsel %vm597, %v671, -inf
        %v680 = vsel %vm597, %v676, -inf
        %v681 = vmax.f32 %v679, %v680
        %v682 = vrot.slane %v681, 4
        %v683 = vmax.f32 %v681, %v682
        %v684 = vrot.slane %v683, 2
        %v685 = vmax.f32 %v683, %v684
        %v686 = vrot.slane %v685, 1
        %v687 = vmax.f32 %v685, %v686
        %v688 = vsub.f32 %v671, %v687
        %v689 = vsub.f32 %v676, %v687
        %v690 = vsel %vm597, %v688, -inf
        %691 = vmax.xlane.f32.xlu0 %v690
        %v692 = vpop.xlane.xlu0 %691
        %v693 = vsel %vm597, %v689, -inf
        %694 = vmax.xlane.f32.xlu0 %v693
        %v695 = vpop.xlane.xlu0 %694
        %v696 = vsub.f32 %v688, %v692
        %v697 = vsub.f32 %v689, %v695
        %v698 = vmul.f32 %v696, 1.442695
        %v699 = vpow.pop %v698
        %v700 = vmul.f32 %v697, 1.442695
        %v701 = vpow.pop %v700
        %v702 = vsel %vm597, %v699, 0.0
        %703 = vadd.xlane.f32.xlu0 %v702
        %v704 = vpop.xlane.xlu0 %703
        %v705 = vsel %vm597, %v701, 0.0
        %706 = vadd.xlane.f32.xlu0 %v705
        %v707 = vpop.xlane.xlu0 %706
        %v708 = vrcp.pop %v704
        %v709 = vrcp.pop %v707
        %v710 = vmul.f32 %v699, %v708
        %v711 = vmul.f32 %v701, %v709
        %712 = vst.msk [vmem:[%s244] sm:$0xff] %vm597, %v710
        %713 = vst.msk [vmem:[%s244 + $0x8] sm:$0xff] %vm597, %v711
        %s714 = sand.u32 %s159, 1
        %s715 = scalar_lea.sflag [#allocation3], %s714
        %s716 = sand.u32 %s159, 1
        %s717 = smul.addr %s716, 16
        %s718 = scalar_lea.vmem [#allocation2], %s717
        // Predicated region
        $region45: #{tpu_custom_call.1} parent=43 // pred_check
          %p719 = pneg %p169
        $region46: #{tpu_custom_call.1} parent=43 // pred_check_branch
          %721 = sbr.rel (%p719) target = $region48
        $region47: #{tpu_custom_call.1} parent=43 // pred_region
          %s723 = ssub.s32 256, 256
          %724 = vsyncadd %s715, %s723
          %s725 = smul.addr %s20, 2
          %s726 = smul.addr %s725, 128
          %s727 = scalar_lea.hbm %s6, %s726
          %s728 = sshll.u32 %s718, 4
          %s729 = int_to_ptr.vmem [resolvable:$true] %s728
          %734 = dma.vmem_to_hbm [thread:$0]  %s729, 256, %s727, %s715, 128, 128, 8
        $region48: #{tpu_custom_call.1} parent=43 // pred_fallthru
          _
      $region44: #{tpu_custom_call.1} parent=5 // pred_fallthru
        _
      %p735 = scmp.le.s32.totalorder 2, %s15
      // Predicated region
      $region49: #{tpu_custom_call.1} parent=5 // pred_check
        %p736 = pneg %p735
      $region50: #{tpu_custom_call.1} parent=5 // pred_check_branch
        %738 = sbr.rel (%p736) target = $region52
      $region51: #{tpu_custom_call.1} parent=5 // pred_region
        %s739 = ssub.s32 %s15, 2
        // Predicated region
        $region53: #{tpu_custom_call.1} parent=51 // pred_check
          %p740 = pneg %p175
        $region54: #{tpu_custom_call.1} parent=51 // pred_check_branch
          %742 = sbr.rel (%p740) target = $region56
        $region55: #{tpu_custom_call.1} parent=51 // pred_region
          %s743 = sand.u32 %s160, 1
          %s744 = scalar_lea.sflag [#allocation3], %s743
          %s745 = sand.u32 %s160, 1
          %s746 = smul.addr %s745, 16
          %s747 = scalar_lea.vmem [#allocation2], %s746
          %748 = dma.done %s744, 256
        $region56: #{tpu_custom_call.1} parent=51 // pred_fallthru
          _
      $region52: #{tpu_custom_call.1} parent=5 // pred_fallthru
        _
    $region6: #{tpu_custom_call.1} parent=1 // loop_footer
      %s19 = sadd.s32 1, %s15
    $region7: #{tpu_custom_call.1} parent=1 // loop_footer_branch
      %14 = sbr.rel target = $region3
    $region8: #{tpu_custom_call.1} parent=1 // loop_exit
      _
    %749 = vsyncpa [#allocation3], 1
    %s750 = scalar_lea.sflag [#allocation3], 1
    %751 = vsyncpa %s750, 1

</llo_original>
